<compile_context>
chip_gen: v7x
topology: tpu7x:2x2x1
jax: 0.10.0
libtpu: 0.0.40
codegen_flags: <defaults>
</compile_context>

<pallas_src>
import jax
import jax.numpy as jnp
from jax.experimental import pallas as pl
from jax.experimental.pallas import tpu as pltpu


def gaussian_vardist_kernel(xt_ref, t_ref, w1x_ref, w1t_ref, b1_ref,
                            w2p_ref, b2p_ref, onehot_ref, out_ref):
    x = xt_ref[...]          # (TB, F)
    t = t_ref[...]           # (TB, 1)

    # posterior_mu_model: MLP on cat([x_t, t], dim=-1), concat folded into
    # (x @ W1x) + broadcast(t * W1t_row).
    h = jnp.tanh(
        jnp.dot(x, w1x_ref[...], preferred_element_type=jnp.float32)
        + t * w1t_ref[...]
        + b1_ref[...]
    )
    # W2/b2 are zero-padded to LP lanes -> mu occupies lanes 0..D-1, lanes >= D are 0.
    mu_slab = jnp.dot(h, w2p_ref[...], preferred_element_type=jnp.float32) + b2p_ref[...]

    # sigma scale = (1 - 0.99 * clamp(t, 0, 1))^2, packed into lane D of the slab
    # via a resident one-hot row (single broadcast multiply; no dense D*D writeback).
    tc = jnp.clip(t, 0.0, 1.0)                 # (TB, 1)
    scale = (1.0 - 0.99 * tc) ** 2             # (TB, 1)
    out_ref[...] = mu_slab + scale * onehot_ref[...]


def _round_up(n, m):
    return ((n + m - 1) // m) * m


def gaussian_variational_dist(x_t, t, params):
    """Forward of GaussianVariationalDist (2D-input branch, no logsigma model).

    Returns (mu, sigma): parameters of the MultivariateNormal the torch module builds.
    """
    w1x, w1t, b1, w2, b2 = params
    B, F = x_t.shape
    H = w1x.shape[1]
    D = w2.shape[1]

    # glue: t scalar -> (B,), then (B,) -> (B, 1) so it can be "concatenated" with x_t.
    if t.ndim == 0:
        t = jnp.broadcast_to(t, (B,))
    if t.ndim == 1:
        t = t[:, None]
    t = t.astype(jnp.float32)
    x_t = x_t.astype(jnp.float32)

    # Lane-dense packed output: mu in lanes [0, D), sigma scale at lane D, padded to 128.
    LP = _round_up(D + 1, 128)
    w2p = jnp.zeros((H, LP), jnp.float32).at[:, :D].set(w2)
    b2p = jnp.zeros((1, LP), jnp.float32).at[:, :D].set(b2)
    onehot = jnp.zeros((1, LP), jnp.float32).at[0, D].set(1.0)

    # Batch tile: as large as reasonable (per-step buffers are ~TB*LP*4 B, tiny), but
    # capped at ~ceil(B/2) so large batches keep >=2 parallel grid steps (v7x 2-TC).
    TB = min(1024, max(8, _round_up((B + 1) // 2, 8)))
    B_pad = pl.cdiv(B, TB) * TB
    if B_pad != B:
        x_t = jnp.pad(x_t, ((0, B_pad - B), (0, 0)))
        t = jnp.pad(t, ((0, B_pad - B), (0, 0)))
    grid = (B_pad // TB,)

    def batch_spec(rows, cols):
        return pl.BlockSpec((rows, cols), lambda i: (i, 0))

    def resident_spec(shape):
        return pl.BlockSpec(shape, lambda i: (0, 0))

    out = pl.pallas_call(
        gaussian_vardist_kernel,
        out_shape=jax.ShapeDtypeStruct((B_pad, LP), jnp.float32),
        grid=grid,
        in_specs=[
            batch_spec(TB, F),        # x_t tile
            batch_spec(TB, 1),        # t tile
            resident_spec((F, H)),    # W1 rows for x_t (resident)
            resident_spec((1, H)),    # W1 row for t    (resident)
            resident_spec((1, H)),    # b1              (resident)
            resident_spec((H, LP)),   # W2 (lane-padded, resident)
            resident_spec((1, LP)),   # b2 (lane-padded, resident)
            resident_spec((1, LP)),   # one-hot row for the sigma-scale lane (resident)
        ],
        out_specs=batch_spec(TB, LP),  # packed [mu | scale | 0...] slab, unmasked stores
        compiler_params=pltpu.CompilerParams(
            dimension_semantics=("parallel",),
        ),
    )(x_t, t, w1x, w1t, b1, w2p, b2p, onehot)

    mu = out[:B, :D]
    scale = out[:B, D:D + 1]                               # (B, 1)
    sigma = scale[:, :, None] * jnp.eye(D, dtype=jnp.float32)[None]  # expand outside kernel
    return mu, sigma


def init_params(key, feat, hidden, out):
    # Deterministic synthetic init for posterior_mu_model:
    #   Linear(feat+1, hidden) -> tanh -> Linear(hidden, out)
    k1, k2, k3 = jax.random.split(key, 3)
    w1 = jax.random.normal(k1, (feat + 1, hidden), jnp.float32) * 0.1
    w1x, w1t = w1[:feat], w1[feat:]              # split concat into x-part / t-part
    b1 = jnp.zeros((1, hidden), jnp.float32)
    w2 = jax.random.normal(k2, (hidden, out), jnp.float32) * 0.1
    b2 = jax.random.normal(k3, (1, out), jnp.float32) * 0.01
    return (w1x, w1t, b1, w2, b2)


def reference(x_t, t, params):
    # plain-JAX reference mirroring the torch forward (for a sanity check)
    w1x, w1t, b1, w2, b2 = params
    B = x_t.shape[0]
    if t.ndim == 0:
        t = jnp.broadcast_to(t, (B,))
    if t.ndim == 1:
        t = t[:, None]
    xt_cat = jnp.concatenate([x_t, t], axis=-1)
    w1 = jnp.concatenate([w1x, w1t], axis=0)
    mu = jnp.tanh(xt_cat @ w1 + b1) @ w2 + b2
    D = mu.shape[1]
    tc = jnp.clip(t, 0.0, 1.0)
    sigma = ((1.0 - 0.99 * tc) ** 2)[:, :, None] * jnp.eye(D)[None]
    return mu, sigma


if __name__ == "__main__":
    B, F, H, D = 8, 7, 32, 16
    key = jax.random.PRNGKey(0)
    kx, kt, kp = jax.random.split(key, 3)

    x_t = jax.random.normal(kx, (B, F), jnp.float32)
    t = jax.random.uniform(kt, (B,), jnp.float32)
    params = init_params(kp, F, H, D)

    mu, sigma = jax.block_until_ready(gaussian_variational_dist(x_t, t, params))
    mu_ref, sigma_ref = reference(x_t, t, params)
    assert jnp.allclose(mu, mu_ref, atol=1e-5), "mu mismatch"
    assert jnp.allclose(sigma, sigma_ref, atol=1e-5), "sigma mismatch"

    # batch-padding path (B not a multiple of the sublane tile)
    B2 = 5
    x_t2 = jax.random.normal(kx, (B2, F), jnp.float32)
    t2 = jax.random.uniform(kt, (B2,), jnp.float32)
    mu2, sigma2 = jax.block_until_ready(gaussian_variational_dist(x_t2, t2, params))
    mu2_ref, sigma2_ref = reference(x_t2, t2, params)
    assert jnp.allclose(mu2, mu2_ref, atol=1e-5), "mu mismatch (padded batch)"
    assert jnp.allclose(sigma2, sigma2_ref, atol=1e-5), "sigma mismatch (padded batch)"

    # multi-step grid path (>=2 parallel grid steps) with a scalar t
    B3 = 300
    x_t3 = jax.random.normal(kx, (B3, F), jnp.float32)
    t3 = jnp.float32(0.37)
    mu3, sigma3 = jax.block_until_ready(gaussian_variational_dist(x_t3, t3, params))
    mu3_ref, sigma3_ref = reference(x_t3, t3, params)
    assert jnp.allclose(mu3, mu3_ref, atol=1e-5), "mu mismatch (multi-step grid)"
    assert jnp.allclose(sigma3, sigma3_ref, atol=1e-5), "sigma mismatch (multi-step grid)"

    print("KERNEL_OK")
</pallas_src>

<mosaic_0001>
module attributes {stable_mosaic.version = 11 : i64} {
  func.func @gaussian_vardist_kernel(%arg0: i32, %arg1: memref<8x7xf32, #tpu.memory_space<vmem>>, %arg2: memref<8x1xf32, #tpu.memory_space<vmem>>, %arg3: memref<7x32xf32, #tpu.memory_space<vmem>>, %arg4: memref<1x32xf32, #tpu.memory_space<vmem>>, %arg5: memref<1x32xf32, #tpu.memory_space<vmem>>, %arg6: memref<32x128xf32, #tpu.memory_space<vmem>>, %arg7: memref<1x128xf32, #tpu.memory_space<vmem>>, %arg8: memref<1x128xf32, #tpu.memory_space<vmem>>, %arg9: memref<8x128xf32, #tpu.memory_space<vmem>>) attributes {dimension_semantics = [#tpu.dimension_semantics<parallel>], iteration_bounds = array<i64: 1>, scalar_prefetch = 0 : i64, scratch_operands = 0 : i64, tpu.core_type = #tpu.core_type<tc>, window_params = [{transform_indices = @transform_0, window_bounds = array<i64: 8, 7>}, {transform_indices = @transform_1, window_bounds = array<i64: 8, 1>}, {pipeline_mode = #tpu.pipeline_mode<synchronous>, transform_indices = @transform_2, window_bounds = array<i64: 7, 32>}, {pipeline_mode = #tpu.pipeline_mode<synchronous>, transform_indices = @transform_3, window_bounds = array<i64: 1, 32>}, {pipeline_mode = #tpu.pipeline_mode<synchronous>, transform_indices = @transform_4, window_bounds = array<i64: 1, 32>}, {pipeline_mode = #tpu.pipeline_mode<synchronous>, transform_indices = @transform_5, window_bounds = array<i64: 32, 128>}, {pipeline_mode = #tpu.pipeline_mode<synchronous>, transform_indices = @transform_6, window_bounds = array<i64: 1, 128>}, {pipeline_mode = #tpu.pipeline_mode<synchronous>, transform_indices = @transform_7, window_bounds = array<i64: 1, 128>}, {transform_indices = @transform_8, window_bounds = array<i64: 8, 128>}]} {
    %c0 = arith.constant 0 : index
    %c0_0 = arith.constant 0 : index
    %0 = vector.load %arg1[%c0, %c0_0] : memref<8x7xf32, #tpu.memory_space<vmem>>, vector<8x7xf32>
    %c0_1 = arith.constant 0 : index
    %c0_2 = arith.constant 0 : index
    %1 = vector.load %arg2[%c0_1, %c0_2] : memref<8x1xf32, #tpu.memory_space<vmem>>, vector<8x1xf32>
    %c0_3 = arith.constant 0 : index
    %c0_4 = arith.constant 0 : index
    %2 = vector.load %arg3[%c0_3, %c0_4] : memref<7x32xf32, #tpu.memory_space<vmem>>, vector<7x32xf32>
    %cst = arith.constant dense<0.000000e+00> : vector<8x32xf32>
    %3 = tpu.matmul %0, %2, %cst {dimension_numbers = #tpu.dot_dimension_numbers<[1], [0], [0], [1], [0, 0, 1, 1], [], []>} : vector<8x7xf32>, vector<7x32xf32>, vector<8x32xf32> -> vector<8x32xf32>
    %c0_5 = arith.constant 0 : index
    %c0_6 = arith.constant 0 : index
    %4 = vector.load %arg4[%c0_5, %c0_6] : memref<1x32xf32, #tpu.memory_space<vmem>>, vector<1x32xf32>
    %5 = vector.broadcast %1 : vector<8x1xf32> to vector<8x32xf32>
    %6 = vector.broadcast %4 : vector<1x32xf32> to vector<8x32xf32>
    %7 = arith.mulf %5, %6 : vector<8x32xf32>
    %8 = arith.addf %3, %7 : vector<8x32xf32>
    %c0_7 = arith.constant 0 : index
    %c0_8 = arith.constant 0 : index
    %9 = vector.load %arg5[%c0_7, %c0_8] : memref<1x32xf32, #tpu.memory_space<vmem>>, vector<1x32xf32>
    %10 = vector.broadcast %9 : vector<1x32xf32> to vector<8x32xf32>
    %11 = arith.addf %8, %10 : vector<8x32xf32>
    %12 = math.tanh %11 : vector<8x32xf32>
    %c0_9 = arith.constant 0 : index
    %c0_10 = arith.constant 0 : index
    %13 = vector.load %arg6[%c0_9, %c0_10] : memref<32x128xf32, #tpu.memory_space<vmem>>, vector<32x128xf32>
    %cst_11 = arith.constant dense<0.000000e+00> : vector<8x128xf32>
    %14 = tpu.matmul %12, %13, %cst_11 {dimension_numbers = #tpu.dot_dimension_numbers<[1], [0], [0], [1], [0, 0, 1, 1], [], []>} : vector<8x32xf32>, vector<32x128xf32>, vector<8x128xf32> -> vector<8x128xf32>
    %c0_12 = arith.constant 0 : index
    %c0_13 = arith.constant 0 : index
    %15 = vector.load %arg7[%c0_12, %c0_13] : memref<1x128xf32, #tpu.memory_space<vmem>>, vector<1x128xf32>
    %16 = vector.broadcast %15 : vector<1x128xf32> to vector<8x128xf32>
    %17 = arith.addf %14, %16 : vector<8x128xf32>
    %cst_14 = arith.constant 0.000000e+00 : f32
    %cst_15 = arith.constant 1.000000e+00 : f32
    %18 = vector.broadcast %cst_14 : f32 to vector<8x1xf32>
    %19 = arith.maximumf %18, %1 : vector<8x1xf32>
    %20 = vector.broadcast %cst_15 : f32 to vector<8x1xf32>
    %21 = arith.minimumf %20, %19 : vector<8x1xf32>
    %cst_16 = arith.constant 9.900000e-01 : f32
    %22 = vector.broadcast %cst_16 : f32 to vector<8x1xf32>
    %23 = arith.mulf %22, %21 : vector<8x1xf32>
    %cst_17 = arith.constant 1.000000e+00 : f32
    %24 = vector.broadcast %cst_17 : f32 to vector<8x1xf32>
    %25 = arith.subf %24, %23 : vector<8x1xf32>
    %26 = arith.mulf %25, %25 : vector<8x1xf32>
    %c0_18 = arith.constant 0 : index
    %c0_19 = arith.constant 0 : index
    %27 = vector.load %arg8[%c0_18, %c0_19] : memref<1x128xf32, #tpu.memory_space<vmem>>, vector<1x128xf32>
    %28 = vector.broadcast %26 : vector<8x1xf32> to vector<8x128xf32>
    %29 = vector.broadcast %27 : vector<1x128xf32> to vector<8x128xf32>
    %30 = arith.mulf %28, %29 : vector<8x128xf32>
    %31 = arith.addf %17, %30 : vector<8x128xf32>
    %c0_20 = arith.constant 0 : index
    %c0_21 = arith.constant 0 : index
    %32 = vector.load %arg9[%c0_20, %c0_21] : memref<8x128xf32, #tpu.memory_space<vmem>>, vector<8x128xf32>
    tpu.vector_store %arg9[%c0_20, %c0_21], %31 {strides = array<i32>} : memref<8x128xf32, #tpu.memory_space<vmem>>, vector<8x128xf32>,
    return
  }
  func.func @transform_0(%arg0: i32) -> (i32, i32) {
    %c0_i32 = arith.constant 0 : i32
    %c0_i32_0 = arith.constant 0 : i32
    return %arg0, %c0_i32 : i32, i32
  }
  func.func @transform_1(%arg0: i32) -> (i32, i32) {
    %c0_i32 = arith.constant 0 : i32
    %c0_i32_0 = arith.constant 0 : i32
    return %arg0, %c0_i32 : i32, i32
  }
  func.func @transform_2(%arg0: i32) -> (i32, i32) {
    %c0_i32 = arith.constant 0 : i32
    %c0_i32_0 = arith.constant 0 : i32
    %c0_i32_1 = arith.constant 0 : i32
    return %c0_i32, %c0_i32_0 : i32, i32
  }
  func.func @transform_3(%arg0: i32) -> (i32, i32) {
    %c0_i32 = arith.constant 0 : i32
    %c0_i32_0 = arith.constant 0 : i32
    %c0_i32_1 = arith.constant 0 : i32
    return %c0_i32, %c0_i32_0 : i32, i32
  }
  func.func @transform_4(%arg0: i32) -> (i32, i32) {
    %c0_i32 = arith.constant 0 : i32
    %c0_i32_0 = arith.constant 0 : i32
    %c0_i32_1 = arith.constant 0 : i32
    return %c0_i32, %c0_i32_0 : i32, i32
  }
  func.func @transform_5(%arg0: i32) -> (i32, i32) {
    %c0_i32 = arith.constant 0 : i32
    %c0_i32_0 = arith.constant 0 : i32
    %c0_i32_1 = arith.constant 0 : i32
    return %c0_i32, %c0_i32_0 : i32, i32
  }
  func.func @transform_6(%arg0: i32) -> (i32, i32) {
    %c0_i32 = arith.constant 0 : i32
    %c0_i32_0 = arith.constant 0 : i32
    %c0_i32_1 = arith.constant 0 : i32
    return %c0_i32, %c0_i32_0 : i32, i32
  }
  func.func @transform_7(%arg0: i32) -> (i32, i32) {
    %c0_i32 = arith.constant 0 : i32
    %c0_i32_0 = arith.constant 0 : i32
    %c0_i32_1 = arith.constant 0 : i32
    return %c0_i32, %c0_i32_0 : i32, i32
  }
  func.func @transform_8(%arg0: i32) -> (i32, i32) {
    %c0_i32 = arith.constant 0 : i32
    %c0_i32_0 = arith.constant 0 : i32
    return %arg0, %c0_i32 : i32, i32
  }
}

</mosaic_0001>

<llo_original>
// kernel: tpu_custom_call.1
$region0: #{tpu_custom_call.1}
  #allocation0 [shape = 'u32[]', space=smem, size = 0x4, offset = 0x4, fixed_abs, tag = 'smem constant byte address 0x4 - core index']
  #allocation1 [shape = 'u32[144,128]{1,0:T(1,128)}', space=vmem, size = 0x12000, scoped, tag = 'internal scratch']
  %s0 = inlined_call_operand.vmem [shape: f32[8,7], index: 0, kind: input, shape index: {}]
  %s1 = inlined_call_operand.vmem [shape: f32[8,1], index: 1, kind: input, shape index: {}]
  %s2 = inlined_call_operand.vmem [shape: f32[7,32], index: 2, kind: input, shape index: {}]
  %s3 = inlined_call_operand.vmem [shape: f32[1,32], index: 3, kind: input, shape index: {}]
  %s4 = inlined_call_operand.vmem [shape: f32[1,32], index: 4, kind: input, shape index: {}]
  %s5 = inlined_call_operand.hbm [shape: f32[32,128], index: 5, kind: input, shape index: {}]
  %s6 = inlined_call_operand.vmem [shape: f32[1,128], index: 6, kind: input, shape index: {}]
  %s7 = inlined_call_operand.vmem [shape: f32[1,128], index: 7, kind: input, shape index: {}]
  %s8 = inlined_call_operand.hbm [shape: f32[8,128], index: 8, kind: output, shape index: {}]
  %s9 = sld [smem:[#allocation0]]
  $region46: #{tpu_custom_call.1} parent=0
    _
  %s11 = ssub.s32 1, %s9
  %s12 = scalar_select 0, %s11, %s9
  $region1: #{tpu_custom_call.1} parent=0
    #allocation2 [shape = 'u8[16384]{0}', space=vmem, size = 0x4000, scoped, tag = 'input window, operand 5, single buffered']
    #allocation3 [shape = 's32[1]{0}', space=sflag, size = 0x4, scoped, tag = 'scoped memory for tpu_custom_call.1']
    #allocation4 [shape = 's32[1]{0}', space=sflag, size = 0x4, scoped, tag = 'scoped memory for tpu_custom_call.1']
    #allocation5 [shape = 'u8[4096]{0}', space=vmem, size = 0x1000, scoped, tag = 'output window, operand 0, single buffered']
    %13 = vsyncpa [#allocation3], 0
    %14 = vsyncpa [#allocation4], 0
    // Predicated region
    $region2: #{tpu_custom_call.1} parent=1 // pred_check
      _
    $region3: #{tpu_custom_call.1} parent=1 // pred_check_branch
      %16 = sbr.rel (0) target = $region5
    $region4: #{tpu_custom_call.1} parent=1 // pred_region
      _
    $region5: #{tpu_custom_call.1} parent=1 // pred_fallthru
      _
    // Predicated region
    $region6: #{tpu_custom_call.1} parent=1 // pred_check
      _
    $region7: #{tpu_custom_call.1} parent=1 // pred_check_branch
      %18 = sbr.rel (0) target = $region9
    $region8: #{tpu_custom_call.1} parent=1 // pred_region
      _
    $region9: #{tpu_custom_call.1} parent=1 // pred_fallthru
      _
    // Predicated region
    $region10: #{tpu_custom_call.1} parent=1 // pred_check
      _
    $region11: #{tpu_custom_call.1} parent=1 // pred_check_branch
      %20 = sbr.rel (0) target = $region13
    $region12: #{tpu_custom_call.1} parent=1 // pred_region
      _
    $region13: #{tpu_custom_call.1} parent=1 // pred_fallthru
      _
    // Predicated region
    $region14: #{tpu_custom_call.1} parent=1 // pred_check
      _
    $region15: #{tpu_custom_call.1} parent=1 // pred_check_branch
      %22 = sbr.rel (0) target = $region17
    $region16: #{tpu_custom_call.1} parent=1 // pred_region
      _
    $region17: #{tpu_custom_call.1} parent=1 // pred_fallthru
      _
    // Predicated region
    $region18: #{tpu_custom_call.1} parent=1 // pred_check
      _
    $region19: #{tpu_custom_call.1} parent=1 // pred_check_branch
      %24 = sbr.rel (0) target = $region21
    $region20: #{tpu_custom_call.1} parent=1 // pred_region
      _
    $region21: #{tpu_custom_call.1} parent=1 // pred_fallthru
      _
    // Predicated region
    $region22: #{tpu_custom_call.1} parent=1 // pred_check
      _
    $region23: #{tpu_custom_call.1} parent=1 // pred_check_branch
      %26 = sbr.rel (0) target = $region25
    $region24: #{tpu_custom_call.1} parent=1 // pred_region
      %s28 = ssub.s32 512, 512
      %29 = vsyncadd [#allocation3], %s28
      %s30 = sshll.u32 [#allocation2], 4
      %s31 = int_to_ptr.vmem [resolvable:$true] %s30
      %36 = dma.hbm_to_vmem [thread:$0]  %s5, 512, %s31, [#allocation3], 128, 128, 8
    $region25: #{tpu_custom_call.1} parent=1 // pred_fallthru
      _
    // Predicated region
    $region26: #{tpu_custom_call.1} parent=1 // pred_check
      _
    $region27: #{tpu_custom_call.1} parent=1 // pred_check_branch
      %38 = sbr.rel (0) target = $region29
    $region28: #{tpu_custom_call.1} parent=1 // pred_region
      _
    $region29: #{tpu_custom_call.1} parent=1 // pred_fallthru
      _
    // Predicated region
    $region30: #{tpu_custom_call.1} parent=1 // pred_check
      _
    $region31: #{tpu_custom_call.1} parent=1 // pred_check_branch
      %40 = sbr.rel (0) target = $region33
    $region32: #{tpu_custom_call.1} parent=1 // pred_region
      _
    $region33: #{tpu_custom_call.1} parent=1 // pred_fallthru
      _
    // Predicated region
    $region34: #{tpu_custom_call.1} parent=1 // pred_check
      _
    $region35: #{tpu_custom_call.1} parent=1 // pred_check_branch
      %42 = sbr.rel (0) target = $region37
    $region36: #{tpu_custom_call.1} parent=1 // pred_region
      %43 = dma.done [#allocation3], 512
    $region37: #{tpu_custom_call.1} parent=1 // pred_fallthru
      _
    %v44 = vld [vmem:[%s0] sm:$0xff]
    %v45 = vld [vmem:[%s1] sm:$0xff]
    %v46 = vld [vmem:[%s2] sm:$0x7f]
    %v47 = vld [vmem:[%s3] sm:$0x1]
    %49 = vset.pattern.permute.xlu0 0
    %50 = vperm.xlu0 %49, %v45
    %v51 = vpop.permute.xlu0 %50
    %v54 = vlaneseq
    %v55 = vshrl.u32 %v54, 7
    %v56 = vsub.s32 0, %v55
    %v57 = vrot.slane %v47, %v56
    %v59 = vmul.f32 %v51, %v57
    %vm60 = vcmask 56320
    %v62 = vsel %vm60, %v44, 0
    %vm64 = vcmask 1046528
    %v66 = vsel %vm64, %v46, 0
    %68 = vmatprep.subr.mxu0 0.0
    %69 = vmatpush1.msra.mxu0 %v66
    %70 = vmatprep.subr.mxu0 0.0
    %71 = vmatpush1.msra.mxu0 0.0
    %72 = vmatprep.subr.mxu0 0.0
    %73 = vmatpush1.msra.mxu0 0.0
    %74 = vmatprep.subr.mxu0 0.0
    %75 = vmatpush1.msra.mxu0 0.0
    %76 = vmatprep.subr.mxu0 0.0
    %77 = vmatpush1.msra.mxu0 0.0
    %78 = vmatprep.subr.mxu0 0.0
    %79 = vmatpush1.msra.mxu0 0.0
    %80 = vmatprep.subr.mxu0 0.0
    %81 = vmatpush1.msra.mxu0 0.0
    %82 = vmatprep.subr.mxu0 0.0
    %83 = vmatpush1.msra.mxu0 0.0
    %84 = vmatprep.subr.mxu0 0.0
    %85 = vmatpush1.msra.mxu0 0.0
    %86 = vmatprep.subr.mxu0 0.0
    %87 = vmatpush1.msra.mxu0 0.0
    %88 = vmatprep.subr.mxu0 0.0
    %89 = vmatpush1.msra.mxu0 0.0
    %90 = vmatprep.subr.mxu0 0.0
    %91 = vmatpush1.msra.mxu0 0.0
    %92 = vmatprep.subr.mxu0 0.0
    %93 = vmatpush1.msra.mxu0 0.0
    %94 = vmatprep.subr.mxu0 0.0
    %95 = vmatpush1.msra.mxu0 0.0
    %96 = vmatprep.subr.mxu0 0.0
    %97 = vmatpush1.msra.mxu0 0.0
    %98 = vmatprep.subr.mxu0 0.0
    %99 = vmatpush1.msra.mxu0 0.0
    %100 = vmatprep.subr.mxu0 0.0
    %101 = vmatpush1.msra.mxu0 0.0
    %102 = vmatprep.subr.mxu0 0.0
    %103 = vmatpush1.msra.mxu0 0.0
    %104 = vmatprep.subr.mxu0 0.0
    %105 = vmatpush1.msra.mxu0 0.0
    %106 = vmatprep.subr.mxu0 0.0
    %107 = vmatpush1.msra.mxu0 0.0
    %108 = vmatprep.subr.mxu0 0.0
    %109 = vmatpush1.msra.mxu0 0.0
    %110 = vmatprep.subr.mxu0 0.0
    %111 = vmatpush1.msra.mxu0 0.0
    %112 = vmatprep.subr.mxu0 0.0
    %113 = vmatpush1.msra.mxu0 0.0
    %114 = vmatprep.subr.mxu0 0.0
    %115 = vmatpush1.msra.mxu0 0.0
    %116 = vmatprep.subr.mxu0 0.0
    %117 = vmatpush1.msra.mxu0 0.0
    %118 = vmatprep.subr.mxu0 0.0
    %119 = vmatpush1.msra.mxu0 0.0
    %120 = vmatprep.subr.mxu0 0.0
    %121 = vmatpush1.msra.mxu0 0.0
    %122 = vmatprep.subr.mxu0 0.0
    %123 = vmatpush1.msra.mxu0 0.0
    %124 = vmatprep.subr.mxu0 0.0
    %125 = vmatpush1.msra.mxu0 0.0
    %126 = vmatprep.subr.mxu0 0.0
    %127 = vmatpush1.msra.mxu0 0.0
    %128 = vmatprep.subr.mxu0 0.0
    %129 = vmatpush1.msra.mxu0 0.0
    %130 = vmatprep.subr.mxu0 0.0
    %131 = vmatpush1.msra.mxu0 0.0
    %132 = vmatprep.mubr.f32.mxu0 0.0
    %133 = vmatmul.mubr.f32.gmra.mrb[0].mxu0 %v62
    %v134 = vpop.f32.mrb[0].mxu0
    %v135 = vadd.f32 %v59, %v134
    %v136 = vpop.f32.mrb[0].mxu0
    %137 = vdwg.mxu0
    %v138 = vld [vmem:[%s4] sm:$0x1]
    %v140 = vlaneseq
    %v141 = vshrl.u32 %v140, 7
    %v142 = vsub.s32 0, %v141
    %v143 = vrot.slane %v138, %v142
    %v145 = vadd.f32 %v135, %v143
    %v146 = vtanh.pop %v145
    %v147 = vld [vmem:[#allocation2] sm:$0xff]
    %v148 = vld [vmem:[#allocation2 + $0x8] sm:$0xff]
    %v149 = vld [vmem:[#allocation2 + $0x10] sm:$0xff]
    %v150 = vld [vmem:[#allocation2 + $0x18] sm:$0xff]
    %v151 = vld [vmem:[%s6] sm:$0x1]
    %v153 = vlaneseq
    %v154 = vshrl.u32 %v153, 7
    %v155 = vsub.s32 0, %v154
    %v156 = vrot.slane %v151, %v155
    %vm158 = vcmask 261120
    %v160 = vsel %vm158, %v146, 0
    %162 = vmatprep.subr.mxu0 0.0
    %163 = vmatpush1.msra.mxu0 %v147
    %164 = vmatprep.subr.mxu0 0.0
    %165 = vmatpush1.msra.mxu0 %v148
    %166 = vmatprep.subr.mxu0 0.0
    %167 = vmatpush1.msra.mxu0 %v149
    %168 = vmatprep.subr.mxu0 0.0
    %169 = vmatpush1.msra.mxu0 %v150
    %170 = vmatprep.subr.mxu0 0.0
    %171 = vmatpush1.msra.mxu0 0.0
    %172 = vmatprep.subr.mxu0 0.0
    %173 = vmatpush1.msra.mxu0 0.0
    %174 = vmatprep.subr.mxu0 0.0
    %175 = vmatpush1.msra.mxu0 0.0
    %176 = vmatprep.subr.mxu0 0.0
    %177 = vmatpush1.msra.mxu0 0.0
    %178 = vmatprep.subr.mxu0 0.0
    %179 = vmatpush1.msra.mxu0 0.0
    %180 = vmatprep.subr.mxu0 0.0
    %181 = vmatpush1.msra.mxu0 0.0
    %182 = vmatprep.subr.mxu0 0.0
    %183 = vmatpush1.msra.mxu0 0.0
    %184 = vmatprep.subr.mxu0 0.0
    %185 = vmatpush1.msra.mxu0 0.0
    %186 = vmatprep.subr.mxu0 0.0
    %187 = vmatpush1.msra.mxu0 0.0
    %188 = vmatprep.subr.mxu0 0.0
    %189 = vmatpush1.msra.mxu0 0.0
    %190 = vmatprep.subr.mxu0 0.0
    %191 = vmatpush1.msra.mxu0 0.0
    %192 = vmatprep.subr.mxu0 0.0
    %193 = vmatpush1.msra.mxu0 0.0
    %194 = vmatprep.subr.mxu0 0.0
    %195 = vmatpush1.msra.mxu0 0.0
    %196 = vmatprep.subr.mxu0 0.0
    %197 = vmatpush1.msra.mxu0 0.0
    %198 = vmatprep.subr.mxu0 0.0
    %199 = vmatpush1.msra.mxu0 0.0
    %200 = vmatprep.subr.mxu0 0.0
    %201 = vmatpush1.msra.mxu0 0.0
    %202 = vmatprep.subr.mxu0 0.0
    %203 = vmatpush1.msra.mxu0 0.0
    %204 = vmatprep.subr.mxu0 0.0
    %205 = vmatpush1.msra.mxu0 0.0
    %206 = vmatprep.subr.mxu0 0.0
    %207 = vmatpush1.msra.mxu0 0.0
    %208 = vmatprep.subr.mxu0 0.0
    %209 = vmatpush1.msra.mxu0 0.0
    %210 = vmatprep.subr.mxu0 0.0
    %211 = vmatpush1.msra.mxu0 0.0
    %212 = vmatprep.subr.mxu0 0.0
    %213 = vmatpush1.msra.mxu0 0.0
    %214 = vmatprep.subr.mxu0 0.0
    %215 = vmatpush1.msra.mxu0 0.0
    %216 = vmatprep.subr.mxu0 0.0
    %217 = vmatpush1.msra.mxu0 0.0
    %218 = vmatprep.subr.mxu0 0.0
    %219 = vmatpush1.msra.mxu0 0.0
    %220 = vmatprep.subr.mxu0 0.0
    %221 = vmatpush1.msra.mxu0 0.0
    %222 = vmatprep.subr.mxu0 0.0
    %223 = vmatpush1.msra.mxu0 0.0
    %224 = vmatprep.subr.mxu0 0.0
    %225 = vmatpush1.msra.mxu0 0.0
    %226 = vmatprep.mubr.f32.mxu0 0.0
    %227 = vmatmul.mubr.f32.gmra.mrb[0].mxu0 %v160
    %v228 = vpop.f32.mrb[0].mxu0
    %v229 = vadd.f32 %v156, %v228
    %v230 = vpop.f32.mrb[0].mxu0
    %231 = vdwg.mxu0
    %v232 = vmax.f32 %v45, 0.0
    %v233 = vmin.f32 %v232, 1.0
    %v234 = vmul.f32 %v233, 0.99
    %v235 = vsub.f32 1.0, %v234
    %v236 = vmul.f32 %v235, %v235
    %v237 = vld [vmem:[%s7] sm:$0x1]
    %239 = vset.pattern.permute.xlu0 0
    %240 = vperm.xlu0 %239, %v236
    %v241 = vpop.permute.xlu0 %240
    %v244 = vlaneseq
    %v245 = vshrl.u32 %v244, 7
    %v246 = vsub.s32 0, %v245
    %v247 = vrot.slane %v237, %v246
    %v249 = vmul.f32 %v241, %v247
    %v250 = vadd.f32 %v229, %v249
    %251 = vst [vmem:[#allocation5] sm:$0xff] %v250
    // Predicated region
    $region38: #{tpu_custom_call.1} parent=1 // pred_check
      _
    $region39: #{tpu_custom_call.1} parent=1 // pred_check_branch
      %253 = sbr.rel (0) target = $region41
    $region40: #{tpu_custom_call.1} parent=1 // pred_region
      %s255 = ssub.s32 128, 128
      %256 = vsyncadd [#allocation4], %s255
      %s258 = sshll.u32 [#allocation5], 4
      %s259 = int_to_ptr.vmem [resolvable:$true] %s258
      %261 = dma.vmem_to_hbm [thread:$0]  %s259, 128, %s8, [#allocation4]
    $region41: #{tpu_custom_call.1} parent=1 // pred_fallthru
      _
    // Predicated region
    $region42: #{tpu_custom_call.1} parent=1 // pred_check
      _
    $region43: #{tpu_custom_call.1} parent=1 // pred_check_branch
      %263 = sbr.rel (0) target = $region45
    $region44: #{tpu_custom_call.1} parent=1 // pred_region
      %264 = dma.done [#allocation4], 128
    $region45: #{tpu_custom_call.1} parent=1 // pred_fallthru
      _
    %265 = vsyncpa [#allocation3], 1
    %266 = vsyncpa [#allocation4], 1

</llo_original>
